<compile_context>
chip_gen: v6e
topology: v6e:2x2x1
jax: 0.10.0
libtpu: 0.0.40
codegen_flags: <defaults>
</compile_context>

<pallas_src>
import functools

import jax
import jax.numpy as jnp
from jax.experimental import pallas as pl
from jax.experimental.pallas import tpu as pltpu


def _round_up(x, m):
    return (x + m - 1) // m * m


# ---------------------------------------------------------------------------
# Kernel 1: input projection  U[t,b,:] = x[t,:,b]^T @ W_xh^T   (parallel)
# ---------------------------------------------------------------------------
def _input_proj_kernel(x_ref, w_ref, u_ref):
    # x_ref: (rows_block, I)  w_ref: (I, h_pad)  u_ref: (rows_block, h_pad)
    u_ref[...] = jnp.dot(x_ref[...], w_ref[...], preferred_element_type=jnp.float32)


# ---------------------------------------------------------------------------
# Kernel 2: recurrence  h_t = tanh(h_{t-1} @ W_hh^T + U[t])   (sequential in t)
# ---------------------------------------------------------------------------
def _rnn_rec_kernel(u_ref, h0_ref, whh_ref, out_ref, h_carry, *, t_chunk, mxu_dtype):
    # NOTE: the time-chunk axis MUST remain the last (innermost) grid axis.
    # The carry re-init below is only correct because, for each batch block,
    # all of its time chunks run consecutively (grid = (nb, nt), t fastest).
    t_idx = pl.program_id(1)

    @pl.when(t_idx == 0)
    def _init():
        # New batch block: load its initial hidden state into the carry scratch.
        h_carry[...] = h0_ref[...]

    w = whh_ref[...]  # (h_pad, h_pad), bf16, VMEM-resident (constant index_map)

    def step(t, h):
        # Serial critical path per step: one (bb x h_pad)x(h_pad x h_pad) MXU
        # pass with bf16 operands / f32 accumulate, then f32 VPU add + EUP tanh.
        pre = jnp.dot(h.astype(mxu_dtype), w,
                      preferred_element_type=jnp.float32) + u_ref[t]
        h_new = jnp.tanh(pre)
        out_ref[t] = h_new.astype(out_ref.dtype)   # lands in the chunk slab
        return h_new                               # carry stays in vregs

    h_carry[...] = jax.lax.fori_loop(0, t_chunk, step, h_carry[...], unroll=True)


# ---------------------------------------------------------------------------
# Wrapper
# ---------------------------------------------------------------------------
def rnn_layer_forward_seq(w_xh, w_hh, x_seq, hidden0, *,
                          batch_block=None, t_chunk=None,
                          mxu_dtype=jnp.bfloat16):
    """Run the RNN cell over a whole sequence.

    Args (module layout, matching the PyTorch code):
      w_xh:    (H, I)
      w_hh:    (H, H)
      x_seq:   (T, I, B)  sequence of inputs
      hidden0: (H, B)     initial hidden state
    Returns:
      h_seq:   (T, H, B) with h_seq[t] == tanh(W_xh @ x_seq[t] + W_hh @ h_seq[t-1])
    """
    H, I = w_xh.shape
    T, I2, B = x_seq.shape
    assert I2 == I and w_hh.shape == (H, H) and hidden0.shape == (H, B)

    f32 = jnp.float32
    h_pad = _round_up(H, 128)

    # ---- time chunking (internal loop length per grid step) -----------------
    if t_chunk is None:
        t_chunk = min(T, 32)
    T_pad = _round_up(T, t_chunk)
    nt = T_pad // t_chunk

    # ---- batch blocking ------------------------------------------------------
    b_pad8 = _round_up(B, 8)
    if batch_block is None:
        if b_pad8 <= 8:
            batch_block = 8
        else:
            # v7x megacore: >=2 independent batch blocks; cap rows at 128
            # (matches v5e's 4x128^2 MXU, avoids extra VMEM pressure).
            batch_block = min(128, _round_up((b_pad8 + 1) // 2, 8))
    assert batch_block % 8 == 0
    b_pad = _round_up(b_pad8, batch_block)
    nb = b_pad // batch_block

    # ---- wrapper-side layout plumbing ---------------------------------------
    # W_xh^T, padded on the output (lane) dim only: (I, h_pad). K = I is fine
    # for the MXU; no need to pad x's lane dim (saves HBM bandwidth on x).
    w_xh_t = jnp.zeros((I, h_pad), f32).at[:, :H].set(w_xh.T.astype(f32))
    # W_hh^T padded to (h_pad, h_pad); zero padding keeps padded hidden lanes
    # exactly 0 through the recurrence (tanh(0) == 0).  bf16 for the MXU.
    w_hh_t = jnp.zeros((h_pad, h_pad), f32).at[:H, :H].set(w_hh.T.astype(f32))
    w_hh_t = w_hh_t.astype(mxu_dtype)

    # x: (T, I, B) -> (T, B, I), pad time/batch only, flatten (t, b) rows.
    x_tbi = jnp.transpose(x_seq, (0, 2, 1)).astype(f32)
    x_p = jnp.zeros((T_pad, b_pad, I), f32).at[:T, :B, :].set(x_tbi)
    rows = T_pad * b_pad
    x_rows = x_p.reshape(rows, I)

    # h0: (H, B) -> (B, H), zero-padded to (b_pad, h_pad), kept f32.
    h0_p = jnp.zeros((b_pad, h_pad), f32).at[:B, :H].set(hidden0.T.astype(f32))

    # ---- kernel 1: one big parallel matmul for the input projection ---------
    rows_block = t_chunk * b_pad        # divides rows exactly; small VMEM slab
    n_row_blocks = rows // rows_block

    u_rows = pl.pallas_call(
        _input_proj_kernel,
        out_shape=jax.ShapeDtypeStruct((rows, h_pad), f32),
        grid=(n_row_blocks,),
        in_specs=[
            pl.BlockSpec((rows_block, I), lambda r: (r, 0)),
            pl.BlockSpec((I, h_pad), lambda r: (0, 0)),   # resident weight
        ],
        out_specs=pl.BlockSpec((rows_block, h_pad), lambda r: (r, 0)),
        compiler_params=pltpu.CompilerParams(dimension_semantics=("parallel",)),
        cost_estimate=pl.CostEstimate(
            flops=2 * rows * I * h_pad,
            transcendentals=0,
            bytes_accessed=4 * (rows * I + I * h_pad + rows * h_pad)),
    )(x_rows, w_xh_t)

    u = u_rows.reshape(T_pad, b_pad, h_pad)

    # ---- kernel 2: sequential recurrence over time chunks -------------------
    kernel = functools.partial(_rnn_rec_kernel, t_chunk=t_chunk, mxu_dtype=mxu_dtype)

    out_p = pl.pallas_call(
        kernel,
        out_shape=jax.ShapeDtypeStruct((T_pad, b_pad, h_pad), f32),
        grid=(nb, nt),                       # time is innermost (do not reorder)
        in_specs=[
            # U chunk: streamed per (batch block, time chunk)
            pl.BlockSpec((t_chunk, batch_block, h_pad), lambda b, t: (t, b, 0)),
            # h0: constant over time -> no re-DMA across chunks
            pl.BlockSpec((batch_block, h_pad), lambda b, t: (b, 0)),
            # W_hh^T: constant index_map -> fetched once, VMEM-resident
            pl.BlockSpec((h_pad, h_pad), lambda b, t: (0, 0)),
        ],
        out_specs=pl.BlockSpec((t_chunk, batch_block, h_pad), lambda b, t: (t, b, 0)),
        scratch_shapes=[pltpu.VMEM((batch_block, h_pad), f32)],  # per-core carry
        compiler_params=pltpu.CompilerParams(
            dimension_semantics=("parallel", "arbitrary"),
        ),
        cost_estimate=pl.CostEstimate(
            flops=2 * T_pad * b_pad * h_pad * h_pad,
            transcendentals=T_pad * b_pad * h_pad,
            bytes_accessed=4 * (2 * T_pad * b_pad * h_pad + b_pad * h_pad)
                           + 2 * h_pad * h_pad),
    )(u, h0_p, w_hh_t)

    # Back to module layout: (T_pad, b_pad, h_pad) -> (T, H, B)
    return jnp.transpose(out_p[:T, :B, :H], (0, 2, 1))


def rnn_layer_forward(w_xh, w_hh, x, hidden):
    """Single RNN step: identical semantics to RNNLayer.forward (x:(I,B), hidden:(H,B))."""
    return rnn_layer_forward_seq(w_xh, w_hh, x[None], hidden)[0]


if __name__ == "__main__":
    hidden_size = 64
    input_size = 32     # stands in for X_train[0].shape[1]
    batch = 8
    seq_len = 16

    key = jax.random.PRNGKey(0)
    k_wxh, k_whh, k_x, k_h = jax.random.split(key, 4)

    # Deterministic "randn * 0.01" init, matching the module's __init__ shapes.
    w_xh = jax.random.normal(k_wxh, (hidden_size, input_size), jnp.float32) * 0.01
    w_hh = jax.random.normal(k_whh, (hidden_size, hidden_size), jnp.float32) * 0.01
    x_seq = jax.random.normal(k_x, (seq_len, input_size, batch), jnp.float32)
    h0 = jax.random.normal(k_h, (hidden_size, batch), jnp.float32)

    # Fused multi-step kernel (projection + chunked recurrence).
    h_seq = jax.block_until_ready(rnn_layer_forward_seq(w_xh, w_hh, x_seq, h0))

    # Pure-JAX reference: step-by-step, exactly the module's forward (f32).
    def ref_step(h, x_t):
        h_new = jnp.tanh(w_xh @ x_t + w_hh @ h)
        return h_new, h_new

    _, h_seq_ref = jax.lax.scan(ref_step, h0, x_seq)

    # bf16 MXU operands on the serial path -> slightly looser tolerance than f32.
    assert h_seq.shape == (seq_len, hidden_size, batch)
    assert jnp.allclose(h_seq, h_seq_ref, atol=2e-3, rtol=2e-3)

    # Single-step path (== module forward with one call).
    h1 = jax.block_until_ready(rnn_layer_forward(w_xh, w_hh, x_seq[0], h0))
    h1_ref = jnp.tanh(w_xh @ x_seq[0] + w_hh @ h0)
    assert h1.shape == (hidden_size, batch)
    assert jnp.allclose(h1, h1_ref, atol=2e-3, rtol=2e-3)

    print("KERNEL_OK")
</pallas_src>

<mosaic_0001>
module attributes {stable_mosaic.version = 11 : i64} {
  func.func @_input_proj_kernel(%arg0: i32, %arg1: memref<128x32xf32, #tpu.memory_space<vmem>>, %arg2: memref<32x128xf32, #tpu.memory_space<vmem>>, %arg3: memref<128x128xf32, #tpu.memory_space<vmem>>) attributes {dimension_semantics = [#tpu.dimension_semantics<parallel>], iteration_bounds = array<i64: 1>, scalar_prefetch = 0 : i64, scratch_operands = 0 : i64, tpu.core_type = #tpu.core_type<tc>, window_params = [{transform_indices = @transform_0, window_bounds = array<i64: 128, 32>}, {pipeline_mode = #tpu.pipeline_mode<synchronous>, transform_indices = @transform_1, window_bounds = array<i64: 32, 128>}, {transform_indices = @transform_2, window_bounds = array<i64: 128, 128>}]} {
    %c0 = arith.constant 0 : index
    %c0_0 = arith.constant 0 : index
    %0 = vector.load %arg1[%c0, %c0_0] : memref<128x32xf32, #tpu.memory_space<vmem>>, vector<128x32xf32>
    %c0_1 = arith.constant 0 : index
    %c0_2 = arith.constant 0 : index
    %1 = vector.load %arg2[%c0_1, %c0_2] : memref<32x128xf32, #tpu.memory_space<vmem>>, vector<32x128xf32>
    %cst = arith.constant dense<0.000000e+00> : vector<128x128xf32>
    %2 = tpu.matmul %0, %1, %cst {dimension_numbers = #tpu.dot_dimension_numbers<[1], [0], [0], [1], [0, 0, 1, 1], [], []>} : vector<128x32xf32>, vector<32x128xf32>, vector<128x128xf32> -> vector<128x128xf32>
    %c0_3 = arith.constant 0 : index
    %c0_4 = arith.constant 0 : index
    %3 = vector.load %arg3[%c0_3, %c0_4] : memref<128x128xf32, #tpu.memory_space<vmem>>, vector<128x128xf32>
    tpu.vector_store %arg3[%c0_3, %c0_4], %2 {strides = array<i32>} : memref<128x128xf32, #tpu.memory_space<vmem>>, vector<128x128xf32>,
    return
  }
  func.func @transform_0(%arg0: i32) -> (i32, i32) {
    %c0_i32 = arith.constant 0 : i32
    %c0_i32_0 = arith.constant 0 : i32
    return %arg0, %c0_i32 : i32, i32
  }
  func.func @transform_1(%arg0: i32) -> (i32, i32) {
    %c0_i32 = arith.constant 0 : i32
    %c0_i32_0 = arith.constant 0 : i32
    %c0_i32_1 = arith.constant 0 : i32
    return %c0_i32, %c0_i32_0 : i32, i32
  }
  func.func @transform_2(%arg0: i32) -> (i32, i32) {
    %c0_i32 = arith.constant 0 : i32
    %c0_i32_0 = arith.constant 0 : i32
    return %arg0, %c0_i32 : i32, i32
  }
}

</mosaic_0001>

<llo_original>
// kernel: tpu_custom_call.1
$region0: #{tpu_custom_call.1}
  #allocation0 [shape = 'u32[]', space=smem, size = 0x4, offset = 0x4, fixed_abs, tag = 'smem constant byte address 0x4 - core index']
  #allocation1 [shape = 'u32[144,128]{1,0:T(1,128)}', space=vmem, size = 0x12000, scoped, tag = 'internal scratch']
  %s0 = inlined_call_operand.vmem [shape: f32[128,32], index: 0, kind: input, shape index: {}]
  %s1 = inlined_call_operand.vmem [shape: f32[32,128], index: 1, kind: input, shape index: {}]
  %s2 = inlined_call_operand.hbm [shape: f32[128,128], index: 2, kind: output, shape index: {}]
  %s3 = sld [smem:[#allocation0]]
  $region18: #{tpu_custom_call.1} parent=0
    _
  %s5 = ssub.s32 1, %s3
  %s6 = scalar_select 0, %s5, %s3
  $region1: #{tpu_custom_call.1} parent=0
    #allocation2 [shape = 'u8[65536]{0}', space=vmem, size = 0x10000, scoped, tag = 'output window, operand 0, single buffered']
    #allocation3 [shape = 's32[1]{0}', space=sflag, size = 0x4, scoped, tag = 'scoped memory for tpu_custom_call.1']
    %7 = vsyncpa [#allocation3], 0
    // Predicated region
    $region2: #{tpu_custom_call.1} parent=1 // pred_check
      _
    $region3: #{tpu_custom_call.1} parent=1 // pred_check_branch
      %9 = sbr.rel (0) target = $region5
    $region4: #{tpu_custom_call.1} parent=1 // pred_region
      _
    $region5: #{tpu_custom_call.1} parent=1 // pred_fallthru
      _
    // Predicated region
    $region6: #{tpu_custom_call.1} parent=1 // pred_check
      _
    $region7: #{tpu_custom_call.1} parent=1 // pred_check_branch
      %11 = sbr.rel (0) target = $region9
    $region8: #{tpu_custom_call.1} parent=1 // pred_region
      _
    $region9: #{tpu_custom_call.1} parent=1 // pred_fallthru
      _
    %v12 = vld [vmem:[%s0] sm:$0xff]
    %v13 = vld [vmem:[%s0 + $0x8] sm:$0xff]
    %v14 = vld [vmem:[%s0 + $0x10] sm:$0xff]
    %v15 = vld [vmem:[%s0 + $0x18] sm:$0xff]
    %v16 = vld [vmem:[%s0 + $0x20] sm:$0xff]
    %v17 = vld [vmem:[%s0 + $0x28] sm:$0xff]
    %v18 = vld [vmem:[%s0 + $0x30] sm:$0xff]
    %v19 = vld [vmem:[%s0 + $0x38] sm:$0xff]
    %v20 = vld [vmem:[%s0 + $0x40] sm:$0xff]
    %v21 = vld [vmem:[%s0 + $0x48] sm:$0xff]
    %v22 = vld [vmem:[%s0 + $0x50] sm:$0xff]
    %v23 = vld [vmem:[%s0 + $0x58] sm:$0xff]
    %v24 = vld [vmem:[%s0 + $0x60] sm:$0xff]
    %v25 = vld [vmem:[%s0 + $0x68] sm:$0xff]
    %v26 = vld [vmem:[%s0 + $0x70] sm:$0xff]
    %v27 = vld [vmem:[%s0 + $0x78] sm:$0xff]
    %v28 = vld [vmem:[%s1] sm:$0xff]
    %v29 = vld [vmem:[%s1 + $0x8] sm:$0xff]
    %v30 = vld [vmem:[%s1 + $0x10] sm:$0xff]
    %v31 = vld [vmem:[%s1 + $0x18] sm:$0xff]
    %vm32 = vcmask 261120
    %v34 = vsel %vm32, %v12, 0
    %v37 = vsel %vm32, %v13, 0
    %v40 = vsel %vm32, %v14, 0
    %v43 = vsel %vm32, %v15, 0
    %v46 = vsel %vm32, %v16, 0
    %v49 = vsel %vm32, %v17, 0
    %v52 = vsel %vm32, %v18, 0
    %v55 = vsel %vm32, %v19, 0
    %v58 = vsel %vm32, %v20, 0
    %v61 = vsel %vm32, %v21, 0
    %v64 = vsel %vm32, %v22, 0
    %v67 = vsel %vm32, %v23, 0
    %v70 = vsel %vm32, %v24, 0
    %v73 = vsel %vm32, %v25, 0
    %v76 = vsel %vm32, %v26, 0
    %v79 = vsel %vm32, %v27, 0
    %81 = vmatprep.subr.mxu0 0.0
    %82 = vmatpush1.msra.mxu0 0.0
    %83 = vmatprep.subr.mxu0 0.0
    %84 = vmatpush1.msra.mxu0 0.0
    %85 = vmatprep.subr.mxu0 0.0
    %86 = vmatpush1.msra.mxu0 0.0
    %87 = vmatprep.subr.mxu0 0.0
    %88 = vmatpush1.msra.mxu0 0.0
    %89 = vmatprep.subr.mxu0 0.0
    %90 = vmatpush1.msra.mxu0 0.0
    %91 = vmatprep.subr.mxu0 0.0
    %92 = vmatpush1.msra.mxu0 0.0
    %93 = vmatprep.subr.mxu0 0.0
    %94 = vmatpush1.msra.mxu0 0.0
    %95 = vmatprep.subr.mxu0 0.0
    %96 = vmatpush1.msra.mxu0 0.0
    %97 = vmatprep.subr.mxu0 0.0
    %98 = vmatpush1.msra.mxu0 0.0
    %99 = vmatprep.subr.mxu0 0.0
    %100 = vmatpush1.msra.mxu0 0.0
    %101 = vmatprep.subr.mxu0 0.0
    %102 = vmatpush1.msra.mxu0 0.0
    %103 = vmatprep.subr.mxu0 0.0
    %104 = vmatpush1.msra.mxu0 0.0
    %105 = vmatprep.subr.mxu0 0.0
    %106 = vmatpush1.msra.mxu0 %v31
    %107 = vmatprep.subr.mxu0 0.0
    %108 = vmatpush1.msra.mxu0 %v30
    %109 = vmatprep.subr.mxu0 0.0
    %110 = vmatpush1.msra.mxu0 %v29
    %111 = vmatprep.subr.mxu0 0.0
    %112 = vmatpush1.msra.mxu0 %v28
    %113 = vmatprep.subr.mxu0 0.0
    %114 = vmatpush2.msra.mxu0 0.0
    %115 = vmatprep.subr.mxu0 0.0
    %116 = vmatpush2.msra.mxu0 0.0
    %117 = vmatprep.subr.mxu0 0.0
    %118 = vmatpush2.msra.mxu0 0.0
    %119 = vmatprep.subr.mxu0 0.0
    %120 = vmatpush2.msra.mxu0 0.0
    %121 = vmatprep.subr.mxu0 0.0
    %122 = vmatpush2.msra.mxu0 0.0
    %123 = vmatprep.subr.mxu0 0.0
    %124 = vmatpush2.msra.mxu0 0.0
    %125 = vmatprep.subr.mxu0 0.0
    %126 = vmatpush2.msra.mxu0 0.0
    %127 = vmatprep.subr.mxu0 0.0
    %128 = vmatpush2.msra.mxu0 0.0
    %129 = vmatprep.subr.mxu0 0.0
    %130 = vmatpush2.msra.mxu0 0.0
    %131 = vmatprep.subr.mxu0 0.0
    %132 = vmatpush2.msra.mxu0 0.0
    %133 = vmatprep.subr.mxu0 0.0
    %134 = vmatpush2.msra.mxu0 0.0
    %135 = vmatprep.subr.mxu0 0.0
    %136 = vmatpush2.msra.mxu0 0.0
    %137 = vmatprep.subr.mxu0 0.0
    %138 = vmatpush2.msra.mxu0 0.0
    %139 = vmatprep.subr.mxu0 0.0
    %140 = vmatpush2.msra.mxu0 0.0
    %141 = vmatprep.subr.mxu0 0.0
    %142 = vmatpush2.msra.mxu0 0.0
    %143 = vmatprep.subr.mxu0 0.0
    %144 = vmatpush2.msra.mxu0 0.0
    %145 = vmatprep.mubr.f32.mxu0 0.0
    %146 = vmatmul.mubr.f32.gmra.mxu0 %v34
    %v147 = vpop.f32.mrf.mxu0
    %v148 = vadd.f32 0.0, %v147
    %v149 = vpop.f32.mrf.mxu0
    %150 = vmatprep.mubr.f32.mxu0 0.0
    %151 = vmatmul.mubr.f32.gmra.mxu0 %v37
    %v152 = vpop.f32.mrf.mxu0
    %v153 = vadd.f32 0.0, %v152
    %v154 = vpop.f32.mrf.mxu0
    %155 = vmatprep.mubr.f32.mxu0 0.0
    %156 = vmatmul.mubr.f32.gmra.mxu0 %v40
    %v157 = vpop.f32.mrf.mxu0
    %v158 = vadd.f32 0.0, %v157
    %v159 = vpop.f32.mrf.mxu0
    %160 = vmatprep.mubr.f32.mxu0 0.0
    %161 = vmatmul.mubr.f32.gmra.mxu0 %v43
    %v162 = vpop.f32.mrf.mxu0
    %v163 = vadd.f32 0.0, %v162
    %v164 = vpop.f32.mrf.mxu0
    %165 = vmatprep.mubr.f32.mxu0 0.0
    %166 = vmatmul.mubr.f32.gmra.mxu0 %v46
    %v167 = vpop.f32.mrf.mxu0
    %v168 = vadd.f32 0.0, %v167
    %v169 = vpop.f32.mrf.mxu0
    %170 = vmatprep.mubr.f32.mxu0 0.0
    %171 = vmatmul.mubr.f32.gmra.mxu0 %v49
    %v172 = vpop.f32.mrf.mxu0
    %v173 = vadd.f32 0.0, %v172
    %v174 = vpop.f32.mrf.mxu0
    %175 = vmatprep.mubr.f32.mxu0 0.0
    %176 = vmatmul.mubr.f32.gmra.mxu0 %v52
    %v177 = vpop.f32.mrf.mxu0
    %v178 = vadd.f32 0.0, %v177
    %v179 = vpop.f32.mrf.mxu0
    %180 = vmatprep.mubr.f32.mxu0 0.0
    %181 = vmatmul.mubr.f32.gmra.mxu0 %v55
    %v182 = vpop.f32.mrf.mxu0
    %v183 = vadd.f32 0.0, %v182
    %v184 = vpop.f32.mrf.mxu0
    %185 = vmatprep.mubr.f32.mxu0 0.0
    %186 = vmatmul.mubr.f32.gmra.mxu0 %v58
    %v187 = vpop.f32.mrf.mxu0
    %v188 = vadd.f32 0.0, %v187
    %v189 = vpop.f32.mrf.mxu0
    %190 = vmatprep.mubr.f32.mxu0 0.0
    %191 = vmatmul.mubr.f32.gmra.mxu0 %v61
    %v192 = vpop.f32.mrf.mxu0
    %v193 = vadd.f32 0.0, %v192
    %v194 = vpop.f32.mrf.mxu0
    %195 = vmatprep.mubr.f32.mxu0 0.0
    %196 = vmatmul.mubr.f32.gmra.mxu0 %v64
    %v197 = vpop.f32.mrf.mxu0
    %v198 = vadd.f32 0.0, %v197
    %v199 = vpop.f32.mrf.mxu0
    %200 = vmatprep.mubr.f32.mxu0 0.0
    %201 = vmatmul.mubr.f32.gmra.mxu0 %v67
    %v202 = vpop.f32.mrf.mxu0
    %v203 = vadd.f32 0.0, %v202
    %v204 = vpop.f32.mrf.mxu0
    %205 = vmatprep.mubr.f32.mxu0 0.0
    %206 = vmatmul.mubr.f32.gmra.mxu0 %v70
    %v207 = vpop.f32.mrf.mxu0
    %v208 = vadd.f32 0.0, %v207
    %v209 = vpop.f32.mrf.mxu0
    %210 = vmatprep.mubr.f32.mxu0 0.0
    %211 = vmatmul.mubr.f32.gmra.mxu0 %v73
    %v212 = vpop.f32.mrf.mxu0
    %v213 = vadd.f32 0.0, %v212
    %v214 = vpop.f32.mrf.mxu0
    %215 = vmatprep.mubr.f32.mxu0 0.0
    %216 = vmatmul.mubr.f32.gmra.mxu0 %v76
    %v217 = vpop.f32.mrf.mxu0
    %v218 = vadd.f32 0.0, %v217
    %v219 = vpop.f32.mrf.mxu0
    %220 = vmatprep.mubr.f32.mxu0 0.0
    %221 = vmatmul.mubr.f32.gmra.mxu0 %v79
    %v222 = vpop.f32.mrf.mxu0
    %v223 = vadd.f32 0.0, %v222
    %v224 = vpop.f32.mrf.mxu0
    %225 = vdwg.mxu0
    %226 = vst [vmem:[#allocation2] sm:$0xff] %v148
    %227 = vst [vmem:[#allocation2 + $0x8] sm:$0xff] %v153
    %228 = vst [vmem:[#allocation2 + $0x10] sm:$0xff] %v158
    %229 = vst [vmem:[#allocation2 + $0x18] sm:$0xff] %v163
    %230 = vst [vmem:[#allocation2 + $0x20] sm:$0xff] %v168
    %231 = vst [vmem:[#allocation2 + $0x28] sm:$0xff] %v173
    %232 = vst [vmem:[#allocation2 + $0x30] sm:$0xff] %v178
    %233 = vst [vmem:[#allocation2 + $0x38] sm:$0xff] %v183
    %234 = vst [vmem:[#allocation2 + $0x40] sm:$0xff] %v188
    %235 = vst [vmem:[#allocation2 + $0x48] sm:$0xff] %v193
    %236 = vst [vmem:[#allocation2 + $0x50] sm:$0xff] %v198
    %237 = vst [vmem:[#allocation2 + $0x58] sm:$0xff] %v203
    %238 = vst [vmem:[#allocation2 + $0x60] sm:$0xff] %v208
    %239 = vst [vmem:[#allocation2 + $0x68] sm:$0xff] %v213
    %240 = vst [vmem:[#allocation2 + $0x70] sm:$0xff] %v218
    %241 = vst [vmem:[#allocation2 + $0x78] sm:$0xff] %v223
    // Predicated region
    $region10: #{tpu_custom_call.1} parent=1 // pred_check
      _
    $region11: #{tpu_custom_call.1} parent=1 // pred_check_branch
      %243 = sbr.rel (0) target = $region13
    $region12: #{tpu_custom_call.1} parent=1 // pred_region
      %s245 = ssub.s32 2048, 2048
      %246 = vsyncadd [#allocation3], %s245
      %s247 = sshll.u32 [#allocation2], 4
      %s248 = int_to_ptr.vmem [resolvable:$true] %s247
      %253 = dma.vmem_to_hbm [thread:$0]  %s248, 2048, %s2, [#allocation3], 128, 128, 8
    $region13: #{tpu_custom_call.1} parent=1 // pred_fallthru
      _
    // Predicated region
    $region14: #{tpu_custom_call.1} parent=1 // pred_check
      _
    $region15: #{tpu_custom_call.1} parent=1 // pred_check_branch
      %255 = sbr.rel (0) target = $region17
    $region16: #{tpu_custom_call.1} parent=1 // pred_region
      %256 = dma.done [#allocation3], 2048
    $region17: #{tpu_custom_call.1} parent=1 // pred_fallthru
      _
    %257 = vsyncpa [#allocation3], 1

</llo_original>
